<compile_context>
chip_gen: v7x
topology: tpu7x:2x2x1
jax: 0.10.0
libtpu: 0.0.40
codegen_flags: <defaults>
</compile_context>

<pallas_src>
import jax
import jax.numpy as jnp
from jax import lax
from jax.experimental import pallas as pl
from jax.experimental.pallas import tpu as pltpu

HIDDEN = 256                       # encoder out_dim; must satisfy 128 < HIDDEN <= 256 so that
SPLIT = 128                        # torch.split(iter_memory, 128, dim=2) yields exactly 2 chunks
TIME_TRANSCRIPTION_SCALE = 8.344777745411855
TIME_AUDIO_SCALE = 1.0
POSITION_ENCODING_SIZE = 32        # unused in 'gradient' mode (default mode of the module)


def _round_up(x, m):
    return ((x + m - 1) // m) * m


# -----------------------------------------------------------------------------------------------
# Kernel 1: fused per-modality feature pipeline
#   sigmoid(x@W1+b1) -> sigmoid(@W2+b2) -> (+ positional encoding) -> tanh(@W3+b3) -> @W4+b4
# (pre-transformer + Encoder approximation in a single pallas_call; intermediates stay in VMEM)
# -----------------------------------------------------------------------------------------------
def _fused_pre_encoder_kernel(x_ref, pe_ref,
                              w1_ref, b1_ref, w2_ref, b2_ref,
                              w3_ref, b3_ref, w4_ref, b4_ref,
                              o_ref):
    x = x_ref[...]
    h = jax.nn.sigmoid(
        jnp.dot(x, w1_ref[...], preferred_element_type=jnp.float32) + b1_ref[...])
    x = jax.nn.sigmoid(
        jnp.dot(h, w2_ref[...], preferred_element_type=jnp.float32) + b2_ref[...])
    x = x + pe_ref[...]
    h = jnp.tanh(
        jnp.dot(x, w3_ref[...], preferred_element_type=jnp.float32) + b3_ref[...])
    o_ref[...] = (jnp.dot(h, w4_ref[...], preferred_element_type=jnp.float32)
                  + b4_ref[...]).astype(o_ref.dtype)


def fused_pre_encoder(x, pe, pre_params, enc_params, tm=256):
    """x, pe: (N, E) flattened rows.  Returns (N, HIDDEN)."""
    n, e = x.shape
    w1, b1, w2, b2 = pre_params
    w3, b3, w4, b4 = enc_params
    h_out = w4.shape[1]

    tm_eff = min(tm, _round_up(n, 8))        # large row tile; no divisibility assert — pad rows
    n_pad = _round_up(n, tm_eff)
    if n_pad != n:
        x = jnp.pad(x, ((0, n_pad - n), (0, 0)))
        pe = jnp.pad(pe, ((0, n_pad - n), (0, 0)))

    def rep(shape):
        return pl.BlockSpec(shape, lambda i: (0, 0))

    out = pl.pallas_call(
        _fused_pre_encoder_kernel,
        out_shape=jax.ShapeDtypeStruct((n_pad, h_out), jnp.float32),
        grid_spec=pltpu.PrefetchScalarGridSpec(
            num_scalar_prefetch=0,
            grid=(n_pad // tm_eff,),
            in_specs=[
                pl.BlockSpec((tm_eff, e), lambda i: (i, 0)),
                pl.BlockSpec((tm_eff, e), lambda i: (i, 0)),
                rep(w1.shape), rep(b1.shape), rep(w2.shape), rep(b2.shape),
                rep(w3.shape), rep(b3.shape), rep(w4.shape), rep(b4.shape),
            ],
            out_specs=pl.BlockSpec((tm_eff, h_out), lambda i: (i, 0)),
        ),
        compiler_params=pltpu.CompilerParams(dimension_semantics=("parallel",)),
    )(x, pe, w1, b1, w2, b2, w3, b3, w4, b4)
    return out[:n]


# -----------------------------------------------------------------------------------------------
# Kernel 2: iterative masked attention (the hot serial path of forward) fused with the
# 'gradient'-mode expected-position reduction.  One grid step per B_TILE batch rows; the
# sequential dependency across t (cumsum history of the previous two attention rows) is carried
# in a (2, B_TILE, T_a) VMEM scratch.
# -----------------------------------------------------------------------------------------------
def _iter_attention_kernel(csum_ref, enc_t_ref, enc_a_ref, mask_t_ref, mask_a_ref,
                           w_ref, pos_ref, sa_ref, sb_ref, cs_ref):
    b_tile, t_out, _ = enc_t_ref.shape
    t_a = enc_a_ref.shape[1]

    # F.relu(encoder_*_outputs) from forward()
    et = jnp.maximum(enc_t_ref[...], 0.0)                      # (B, T_out, H)
    ea = jnp.maximum(enc_a_ref[...], 0.0)                      # (B, T_a, H)
    # bf16 MXU operands with f32 accumulation (elementwise math stays f32 — v5e-friendly).
    et16 = et.astype(jnp.bfloat16)
    ea16 = ea.astype(jnp.bfloat16)

    # Per-half score precompute.  Gating the memory halves by a per-audio-position mask commutes
    # with the dot product, so the gates are applied to per-half scores inside the loop instead
    # of re-materializing iter_memory every step.  (K=128 per half maps exactly onto the v5e MXU;
    # on v6e/v7x it uses half the systolic depth — acceptable, gating requires the split.)
    sa_ref[...] = jnp.einsum('bth,bah->bta', et16[:, :, :SPLIT], ea16[:, :, :SPLIT],
                             preferred_element_type=jnp.float32)
    sb_ref[...] = jnp.einsum('bth,bah->bta', et16[:, :, SPLIT:], ea16[:, :, SPLIT:],
                             preferred_element_type=jnp.float32)
    cs_ref[...] = jnp.zeros_like(cs_ref)

    maska = mask_a_ref[...]                                    # (B, T_a)
    csum_mat = csum_ref[...]                                   # (T_a, T_a), hoisted input

    def step(t, carry):
        cs0 = cs_ref[0]            # raw cumsum of attention row from step t-2   (B, T_a)
        cs1 = cs_ref[1]            # raw cumsum of attention row from step t-1   (B, T_a)
        has2 = t >= 2

        # torch: clamp -> [<0.1]=0 -> [>0.1]=1   (values exactly 0.1 stay clamped)
        wm = jnp.clip(cs0, 0.0, 1.0)
        wm = jnp.where(wm < 0.1, 0.0, jnp.where(wm > 0.1, 1.0, wm))
        # torch: clamp -> [<0.1]=0               (no set-to-one for the second mask)
        wmb = jnp.clip(cs1, 0.0, 1.0)
        wmb = jnp.where(wmb < 0.1, 0.0, wmb)

        gate_a = jnp.where(has2, wm, 1.0)
        gate_b = jnp.where(has2, wmb, 1.0)

        row_a = sa_ref[:, pl.ds(t, 1), :].reshape(b_tile, t_a)
        row_b = sb_ref[:, pl.ds(t, 1), :].reshape(b_tile, t_a)
        scores = row_a * gate_a + row_b * gate_b               # (B, T_a)

        it_mask_a = jnp.where(has2, maska * (wm > 0.1).astype(jnp.float32), maska)
        # TODO(synk): Attention class not in the provided source; assumed masked dot-product
        # softmax over memory (masked_fill uses -1e9 instead of -inf to avoid NaN on all-masked).
        scores = jnp.where(it_mask_a > 0.0, scores, -1e9)
        scores = scores - jnp.max(scores, axis=1, keepdims=True)
        e = jnp.exp(scores)
        w_slice = e * pl.reciprocal(jnp.sum(e, axis=1, keepdims=True), approx=True)

        # w[:, t] = w_slice * w_mask   where w_mask is: None at t==0, the raw cumsum of the
        # step-0 row at t==1, and the thresholded cumsum of step t-2 afterwards.
        out_gate = jnp.where(t == 0, jnp.ones_like(wm), jnp.where(t == 1, cs1, wm))
        w_ref[:, pl.ds(t, 1), :] = (w_slice * out_gate).reshape(b_tile, 1, t_a)

        # push cumsum(w_slice) into the 2-deep history (cumsum as a matmul with the hoisted
        # triangular matrix -> MXU, keeps the VPU free on the serial path)
        new_cs = jnp.dot(w_slice, csum_mat, preferred_element_type=jnp.float32)
        cs_ref[0] = cs1
        cs_ref[1] = new_cs
        return carry

    lax.fori_loop(0, t_out, step, 0, unroll=2)

    # TODO(synk): the Attention class's handling of the query (transcription) mask is unknown;
    # it is assumed to zero the returned rows.  It is applied once here, outside the serial loop,
    # and the cumsum gating above uses the pre-query-mask rows so padded transcription positions
    # do not poison the gating of later steps.
    w_all = w_ref[...] * mask_t_ref[...]                       # (B, T_out, T_a) * (B, T_out, 1)
    w_ref[...] = w_all

    # gradient-mode expected position: pos[b, t] = sum_a a * w[b, t, a]
    # (one fused reduce after the loop instead of one per step; lane-dense (B, T_out) output)
    aidx = lax.broadcasted_iota(jnp.float32, (1, 1, t_a), 2)
    pos_ref[...] = jnp.sum(w_all * aidx, axis=2)


def _attention_vmem_bytes(b_tile, t_out, t_a, h):
    f32 = 4
    io = (b_tile * t_out * h + b_tile * t_a * h          # encoder blocks
          + t_a * t_a                                    # cumsum matrix
          + b_tile * t_out + b_tile * t_a                # masks
          + b_tile * t_out * t_a + b_tile * t_out)       # outputs
    scratch = 2 * b_tile * t_out * t_a + 2 * b_tile * t_a
    return (2 * io + scratch) * f32                      # x2 for double buffering


def iter_attention(enc_t, enc_a, mask_transcription, mask_audio, b_tile=8):
    b, t_out, h = enc_t.shape
    t_a = enc_a.shape[1]
    assert SPLIT < h <= 2 * SPLIT, "hidden size must split into exactly two <=128 chunks"

    # batch-tile the serial loop; cap the tile so the VMEM plan also fits v7x (64 MiB physical).
    b_tile = min(b_tile, b)
    while b_tile > 1 and _attention_vmem_bytes(b_tile, t_out, t_a, h) > 48 * 1024 * 1024:
        b_tile = max(1, b_tile // 2)
    b_pad = _round_up(b, b_tile)
    if b_pad != b:
        pad = b_pad - b
        enc_t = jnp.pad(enc_t, ((0, pad), (0, 0), (0, 0)))
        enc_a = jnp.pad(enc_a, ((0, pad), (0, 0), (0, 0)))
        mask_transcription = jnp.pad(mask_transcription, ((0, pad), (0, 0)), constant_values=1.0)
        mask_audio = jnp.pad(mask_audio, ((0, pad), (0, 0)), constant_values=1.0)

    idx = jnp.arange(t_a, dtype=jnp.int32)
    csum_mat = (idx[:, None] <= idx[None, :]).astype(jnp.float32)    # cumsum as a matmul
    mask_t_col = mask_transcription[:, :, None]                      # (B, T_out, 1)

    vmem_limit = max(32 * 1024 * 1024,
                     min(int(_attention_vmem_bytes(b_tile, t_out, t_a, h) * 1.25) + (2 << 20),
                         64 * 1024 * 1024))

    w, pos = pl.pallas_call(
        _iter_attention_kernel,
        out_shape=(jax.ShapeDtypeStruct((b_pad, t_out, t_a), jnp.float32),
                   jax.ShapeDtypeStruct((b_pad, t_out), jnp.float32)),
        grid_spec=pltpu.PrefetchScalarGridSpec(
            num_scalar_prefetch=0,
            grid=(b_pad // b_tile,),
            in_specs=[
                pl.BlockSpec((t_a, t_a), lambda i: (0, 0)),          # fetched once
                pl.BlockSpec((b_tile, t_out, h), lambda i: (i, 0, 0)),
                pl.BlockSpec((b_tile, t_a, h), lambda i: (i, 0, 0)),
                pl.BlockSpec((b_tile, t_out, 1), lambda i: (i, 0, 0)),
                pl.BlockSpec((b_tile, t_a), lambda i: (i, 0)),
            ],
            out_specs=[
                pl.BlockSpec((b_tile, t_out, t_a), lambda i: (i, 0, 0)),
                pl.BlockSpec((b_tile, t_out), lambda i: (i, 0)),
            ],
            scratch_shapes=[
                pltpu.VMEM((b_tile, t_out, t_a), jnp.float32),   # scores, first 128 dims
                pltpu.VMEM((b_tile, t_out, t_a), jnp.float32),   # scores, remaining dims
                pltpu.VMEM((2, b_tile, t_a), jnp.float32),       # cumsum history (t-2, t-1)
            ],
        ),
        compiler_params=pltpu.CompilerParams(
            # batch axis is parallel: megacore sharding / v7x dual-TC split across batch tiles
            dimension_semantics=("parallel",),
            vmem_limit_bytes=vmem_limit,
        ),
    )(csum_mat, enc_t, enc_a, mask_t_col, mask_audio)
    return w[:b], pos[:b]


# -----------------------------------------------------------------------------------------------
# Glue: parameters, positional encoding, and the full forward pass (mode == gradient).
# -----------------------------------------------------------------------------------------------
def sinusoidal_pos_encoding(length, dim, scale):
    # TODO(synk): PositionalEncoding class not in the provided source; standard sinusoidal
    # encoding with `scale` applied to the time index is used (dropout omitted / eval mode).
    pos = jnp.arange(length, dtype=jnp.float32)[:, None] * scale
    i = jnp.arange(dim, dtype=jnp.float32)[None, :]
    ang = pos / jnp.power(10000.0, (2.0 * jnp.floor(i / 2.0)) / dim)
    return jnp.where((jnp.arange(dim) % 2 == 0)[None, :], jnp.sin(ang), jnp.cos(ang))


def _linear(key, din, dout):
    kw, kb = jax.random.split(key)
    lim = 1.0 / float(din) ** 0.5
    w = jax.random.uniform(kw, (din, dout), jnp.float32, minval=-lim, maxval=lim)
    b = jax.random.uniform(kb, (1, dout), jnp.float32, minval=-lim, maxval=lim)
    return w, b


def init_params(key, e_t, e_a, hidden):
    keys = jax.random.split(key, 8)
    w1, b1 = _linear(keys[0], e_t, 32)
    w2, b2 = _linear(keys[1], 32, e_t)
    w3, b3 = _linear(keys[2], e_a, 32)
    w4, b4 = _linear(keys[3], 32, e_a)
    w5, b5 = _linear(keys[4], e_t, hidden)
    w6, b6 = _linear(keys[5], hidden, hidden)
    w7, b7 = _linear(keys[6], e_a, hidden)
    w8, b8 = _linear(keys[7], hidden, hidden)
    return {
        "t_transformer": (w1, b1, w2, b2),
        "a_transformer": (w3, b3, w4, b4),
        "encoder_transcription": (w5, b5, w6, b6),
        "encoder_audio": (w7, b7, w8, b8),
    }


def soft_pointer_forward(params, features_transcription, mask_transcription,
                         features_audio, mask_audio):
    b, t_out, e_t = features_transcription.shape
    t_a, e_a = features_audio.shape[1], features_audio.shape[2]

    # features_transcription[:, :-1] += features_transcription[:, 1:] * 0.55
    ft = jnp.concatenate(
        [features_transcription[:, :-1] + 0.55 * features_transcription[:, 1:],
         features_transcription[:, -1:]], axis=1)
    fa = features_audio

    # TODO(synk): the Encoder class (2-layer recurrent encoder w/ dropout, time_scale) is not in
    # the provided source; approximated by sinusoidal-PE add + Linear -> tanh -> Linear, fused
    # with the pre-transformer MLP (Linear -> Sigmoid -> Linear -> Sigmoid) in one pallas_call
    # per modality.
    pe_t = sinusoidal_pos_encoding(t_out, e_t, TIME_TRANSCRIPTION_SCALE)
    pe_a = sinusoidal_pos_encoding(t_a, e_a, TIME_AUDIO_SCALE)

    enc_t = fused_pre_encoder(
        ft.reshape(b * t_out, e_t),
        jnp.broadcast_to(pe_t[None], (b, t_out, e_t)).reshape(b * t_out, e_t),
        params["t_transformer"], params["encoder_transcription"],
    ).reshape(b, t_out, HIDDEN)
    enc_a = fused_pre_encoder(
        fa.reshape(b * t_a, e_a),
        jnp.broadcast_to(pe_a[None], (b, t_a, e_a)).reshape(b * t_a, e_a),
        params["a_transformer"], params["encoder_audio"],
    ).reshape(b, t_a, HIDDEN)

    # iterative masked attention + expected-position reduction (mode == gradient)
    w, pos = iter_attention(enc_t, enc_a, mask_transcription, mask_audio)
    positions = pos[:, :-1]        # weights_to_positions(...)  -> (B, T_out - 1)
    return positions, w


if __name__ == "__main__":
    B, T_OUT, T_A = 2, 8, 16
    E_T, E_A = 32, 64

    key = jax.random.PRNGKey(0)
    k_ft, k_fa, k_p = jax.random.split(key, 3)
    features_transcription = jax.random.normal(k_ft, (B, T_OUT, E_T), dtype=jnp.float32)
    features_audio = jax.random.normal(k_fa, (B, T_A, E_A), dtype=jnp.float32)
    mask_transcription = jnp.ones((B, T_OUT), jnp.float32)
    mask_audio = jnp.ones((B, T_A), jnp.float32)
    params = init_params(k_p, E_T, E_A, HIDDEN)

    positions, w = soft_pointer_forward(params, features_transcription, mask_transcription,
                                        features_audio, mask_audio)
    jax.block_until_ready((positions, w))
    assert positions.shape == (B, T_OUT - 1)
    assert w.shape == (B, T_OUT, T_A)
    assert bool(jnp.isfinite(positions).all()) and bool(jnp.isfinite(w).all())
    print("KERNEL_OK")
</pallas_src>

<mosaic_0001>
module attributes {stable_mosaic.version = 11 : i64} {
  func.func @_fused_pre_encoder_kernel(%arg0: i32, %arg1: memref<16x32xf32, #tpu.memory_space<vmem>>, %arg2: memref<16x32xf32, #tpu.memory_space<vmem>>, %arg3: memref<32x32xf32, #tpu.memory_space<vmem>>, %arg4: memref<1x32xf32, #tpu.memory_space<vmem>>, %arg5: memref<32x32xf32, #tpu.memory_space<vmem>>, %arg6: memref<1x32xf32, #tpu.memory_space<vmem>>, %arg7: memref<32x256xf32, #tpu.memory_space<vmem>>, %arg8: memref<1x256xf32, #tpu.memory_space<vmem>>, %arg9: memref<256x256xf32, #tpu.memory_space<vmem>>, %arg10: memref<1x256xf32, #tpu.memory_space<vmem>>, %arg11: memref<16x256xf32, #tpu.memory_space<vmem>>) attributes {dimension_semantics = [#tpu.dimension_semantics<parallel>], iteration_bounds = array<i64: 1>, scalar_prefetch = 0 : i64, scratch_operands = 0 : i64, tpu.core_type = #tpu.core_type<tc>, window_params = [{transform_indices = @transform_0, window_bounds = array<i64: 16, 32>}, {transform_indices = @transform_1, window_bounds = array<i64: 16, 32>}, {pipeline_mode = #tpu.pipeline_mode<synchronous>, transform_indices = @transform_2, window_bounds = array<i64: 32, 32>}, {pipeline_mode = #tpu.pipeline_mode<synchronous>, transform_indices = @transform_3, window_bounds = array<i64: 1, 32>}, {pipeline_mode = #tpu.pipeline_mode<synchronous>, transform_indices = @transform_4, window_bounds = array<i64: 32, 32>}, {pipeline_mode = #tpu.pipeline_mode<synchronous>, transform_indices = @transform_5, window_bounds = array<i64: 1, 32>}, {pipeline_mode = #tpu.pipeline_mode<synchronous>, transform_indices = @transform_6, window_bounds = array<i64: 32, 256>}, {pipeline_mode = #tpu.pipeline_mode<synchronous>, transform_indices = @transform_7, window_bounds = array<i64: 1, 256>}, {pipeline_mode = #tpu.pipeline_mode<synchronous>, transform_indices = @transform_8, window_bounds = array<i64: 256, 256>}, {pipeline_mode = #tpu.pipeline_mode<synchronous>, transform_indices = @transform_9, window_bounds = array<i64: 1, 256>}, {transform_indices = @transform_10, window_bounds = array<i64: 16, 256>}]} {
    %c0 = arith.constant 0 : index
    %c0_0 = arith.constant 0 : index
    %0 = vector.load %arg1[%c0, %c0_0] : memref<16x32xf32, #tpu.memory_space<vmem>>, vector<16x32xf32>
    %c0_1 = arith.constant 0 : index
    %c0_2 = arith.constant 0 : index
    %1 = vector.load %arg3[%c0_1, %c0_2] : memref<32x32xf32, #tpu.memory_space<vmem>>, vector<32x32xf32>
    %cst = arith.constant dense<0.000000e+00> : vector<16x32xf32>
    %2 = tpu.matmul %0, %1, %cst {dimension_numbers = #tpu.dot_dimension_numbers<[1], [0], [0], [1], [0, 0, 1, 1], [], []>} : vector<16x32xf32>, vector<32x32xf32>, vector<16x32xf32> -> vector<16x32xf32>
    %c0_3 = arith.constant 0 : index
    %c0_4 = arith.constant 0 : index
    %3 = vector.load %arg4[%c0_3, %c0_4] : memref<1x32xf32, #tpu.memory_space<vmem>>, vector<1x32xf32>
    %4 = vector.broadcast %3 : vector<1x32xf32> to vector<16x32xf32>
    %5 = arith.addf %2, %4 : vector<16x32xf32>
    %6 = arith.negf %5 : vector<16x32xf32>
    %7 = math.exp %6 : vector<16x32xf32>
    %cst_5 = arith.constant 1.000000e+00 : f32
    %8 = vector.broadcast %cst_5 : f32 to vector<16x32xf32>
    %9 = arith.addf %8, %7 : vector<16x32xf32>
    %10 = arith.divf %8, %9 : vector<16x32xf32>
    %c0_6 = arith.constant 0 : index
    %c0_7 = arith.constant 0 : index
    %11 = vector.load %arg5[%c0_6, %c0_7] : memref<32x32xf32, #tpu.memory_space<vmem>>, vector<32x32xf32>
    %cst_8 = arith.constant dense<0.000000e+00> : vector<16x32xf32>
    %12 = tpu.matmul %10, %11, %cst_8 {dimension_numbers = #tpu.dot_dimension_numbers<[1], [0], [0], [1], [0, 0, 1, 1], [], []>} : vector<16x32xf32>, vector<32x32xf32>, vector<16x32xf32> -> vector<16x32xf32>
    %c0_9 = arith.constant 0 : index
    %c0_10 = arith.constant 0 : index
    %13 = vector.load %arg6[%c0_9, %c0_10] : memref<1x32xf32, #tpu.memory_space<vmem>>, vector<1x32xf32>
    %14 = vector.broadcast %13 : vector<1x32xf32> to vector<16x32xf32>
    %15 = arith.addf %12, %14 : vector<16x32xf32>
    %16 = arith.negf %15 : vector<16x32xf32>
    %17 = math.exp %16 : vector<16x32xf32>
    %cst_11 = arith.constant 1.000000e+00 : f32
    %18 = vector.broadcast %cst_11 : f32 to vector<16x32xf32>
    %19 = arith.addf %18, %17 : vector<16x32xf32>
    %20 = arith.divf %18, %19 : vector<16x32xf32>
    %c0_12 = arith.constant 0 : index
    %c0_13 = arith.constant 0 : index
    %21 = vector.load %arg2[%c0_12, %c0_13] : memref<16x32xf32, #tpu.memory_space<vmem>>, vector<16x32xf32>
    %22 = arith.addf %20, %21 : vector<16x32xf32>
    %c0_14 = arith.constant 0 : index
    %c0_15 = arith.constant 0 : index
    %23 = vector.load %arg7[%c0_14, %c0_15] : memref<32x256xf32, #tpu.memory_space<vmem>>, vector<32x256xf32>
    %cst_16 = arith.constant dense<0.000000e+00> : vector<16x256xf32>
    %24 = tpu.matmul %22, %23, %cst_16 {dimension_numbers = #tpu.dot_dimension_numbers<[1], [0], [0], [1], [0, 0, 1, 1], [], []>} : vector<16x32xf32>, vector<32x256xf32>, vector<16x256xf32> -> vector<16x256xf32>
    %c0_17 = arith.constant 0 : index
    %c0_18 = arith.constant 0 : index
    %25 = vector.load %arg8[%c0_17, %c0_18] : memref<1x256xf32, #tpu.memory_space<vmem>>, vector<1x256xf32>
    %26 = vector.broadcast %25 : vector<1x256xf32> to vector<16x256xf32>
    %27 = arith.addf %24, %26 : vector<16x256xf32>
    %28 = math.tanh %27 : vector<16x256xf32>
    %c0_19 = arith.constant 0 : index
    %c0_20 = arith.constant 0 : index
    %29 = vector.load %arg9[%c0_19, %c0_20] : memref<256x256xf32, #tpu.memory_space<vmem>>, vector<256x256xf32>
    %cst_21 = arith.constant dense<0.000000e+00> : vector<16x256xf32>
    %30 = tpu.matmul %28, %29, %cst_21 {dimension_numbers = #tpu.dot_dimension_numbers<[1], [0], [0], [1], [0, 0, 1, 1], [], []>} : vector<16x256xf32>, vector<256x256xf32>, vector<16x256xf32> -> vector<16x256xf32>
    %c0_22 = arith.constant 0 : index
    %c0_23 = arith.constant 0 : index
    %31 = vector.load %arg10[%c0_22, %c0_23] : memref<1x256xf32, #tpu.memory_space<vmem>>, vector<1x256xf32>
    %32 = vector.broadcast %31 : vector<1x256xf32> to vector<16x256xf32>
    %33 = arith.addf %30, %32 : vector<16x256xf32>
    %c0_24 = arith.constant 0 : index
    %c0_25 = arith.constant 0 : index
    %34 = vector.load %arg11[%c0_24, %c0_25] : memref<16x256xf32, #tpu.memory_space<vmem>>, vector<16x256xf32>
    tpu.vector_store %arg11[%c0_24, %c0_25], %33 {strides = array<i32>} : memref<16x256xf32, #tpu.memory_space<vmem>>, vector<16x256xf32>,
    return
  }
  func.func @transform_0(%arg0: i32) -> (i32, i32) {
    %c0_i32 = arith.constant 0 : i32
    %c0_i32_0 = arith.constant 0 : i32
    return %arg0, %c0_i32 : i32, i32
  }
  func.func @transform_1(%arg0: i32) -> (i32, i32) {
    %c0_i32 = arith.constant 0 : i32
    %c0_i32_0 = arith.constant 0 : i32
    return %arg0, %c0_i32 : i32, i32
  }
  func.func @transform_2(%arg0: i32) -> (i32, i32) {
    %c0_i32 = arith.constant 0 : i32
    %c0_i32_0 = arith.constant 0 : i32
    %c0_i32_1 = arith.constant 0 : i32
    return %c0_i32, %c0_i32_0 : i32, i32
  }
  func.func @transform_3(%arg0: i32) -> (i32, i32) {
    %c0_i32 = arith.constant 0 : i32
    %c0_i32_0 = arith.constant 0 : i32
    %c0_i32_1 = arith.constant 0 : i32
    return %c0_i32, %c0_i32_0 : i32, i32
  }
  func.func @transform_4(%arg0: i32) -> (i32, i32) {
    %c0_i32 = arith.constant 0 : i32
    %c0_i32_0 = arith.constant 0 : i32
    %c0_i32_1 = arith.constant 0 : i32
    return %c0_i32, %c0_i32_0 : i32, i32
  }
  func.func @transform_5(%arg0: i32) -> (i32, i32) {
    %c0_i32 = arith.constant 0 : i32
    %c0_i32_0 = arith.constant 0 : i32
    %c0_i32_1 = arith.constant 0 : i32
    return %c0_i32, %c0_i32_0 : i32, i32
  }
  func.func @transform_6(%arg0: i32) -> (i32, i32) {
    %c0_i32 = arith.constant 0 : i32
    %c0_i32_0 = arith.constant 0 : i32
    %c0_i32_1 = arith.constant 0 : i32
    return %c0_i32, %c0_i32_0 : i32, i32
  }
  func.func @transform_7(%arg0: i32) -> (i32, i32) {
    %c0_i32 = arith.constant 0 : i32
    %c0_i32_0 = arith.constant 0 : i32
    %c0_i32_1 = arith.constant 0 : i32
    return %c0_i32, %c0_i32_0 : i32, i32
  }
  func.func @transform_8(%arg0: i32) -> (i32, i32) {
    %c0_i32 = arith.constant 0 : i32
    %c0_i32_0 = arith.constant 0 : i32
    %c0_i32_1 = arith.constant 0 : i32
    return %c0_i32, %c0_i32_0 : i32, i32
  }
  func.func @transform_9(%arg0: i32) -> (i32, i32) {
    %c0_i32 = arith.constant 0 : i32
    %c0_i32_0 = arith.constant 0 : i32
    %c0_i32_1 = arith.constant 0 : i32
    return %c0_i32, %c0_i32_0 : i32, i32
  }
  func.func @transform_10(%arg0: i32) -> (i32, i32) {
    %c0_i32 = arith.constant 0 : i32
    %c0_i32_0 = arith.constant 0 : i32
    return %arg0, %c0_i32 : i32, i32
  }
}

</mosaic_0001>

<llo_original>
// kernel: tpu_custom_call.1
$region0: #{tpu_custom_call.1}
  #allocation0 [shape = 'u32[]', space=smem, size = 0x4, offset = 0x4, fixed_abs, tag = 'smem constant byte address 0x4 - core index']
  #allocation1 [shape = 'u32[144,128]{1,0:T(1,128)}', space=vmem, size = 0x12000, scoped, tag = 'internal scratch']
  %s0 = inlined_call_operand.hbm [shape: f32[16,32], index: 0, kind: input, shape index: {}]
  %s1 = inlined_call_operand.hbm [shape: f32[16,32], index: 1, kind: input, shape index: {}]
  %s2 = inlined_call_operand.hbm [shape: f32[32,32], index: 2, kind: input, shape index: {}]
  %s3 = inlined_call_operand.vmem [shape: f32[1,32], index: 3, kind: input, shape index: {}]
  %s4 = inlined_call_operand.hbm [shape: f32[32,32], index: 4, kind: input, shape index: {}]
  %s5 = inlined_call_operand.vmem [shape: f32[1,32], index: 5, kind: input, shape index: {}]
  %s6 = inlined_call_operand.hbm [shape: f32[32,256], index: 6, kind: input, shape index: {}]
  %s7 = inlined_call_operand.vmem [shape: f32[1,256], index: 7, kind: input, shape index: {}]
  %s8 = inlined_call_operand.hbm [shape: f32[256,256], index: 8, kind: input, shape index: {}]
  %s9 = inlined_call_operand.vmem [shape: f32[1,256], index: 9, kind: input, shape index: {}]
  %s10 = inlined_call_operand.hbm [shape: f32[16,256], index: 10, kind: output, shape index: {}]
  %s11 = sld [smem:[#allocation0]]
  $region74: #{tpu_custom_call.1} parent=0
    _
  %s13 = ssub.s32 1, %s11
  %s14 = scalar_select 0, %s13, %s11
  $region1: #{tpu_custom_call.1} parent=0
    #allocation2 [shape = 'u8[8192]{0}', space=vmem, size = 0x2000, scoped, tag = 'input window, operand 0, single buffered']
    #allocation3 [shape = 's32[1]{0}', space=sflag, size = 0x4, scoped, tag = 'scoped memory for tpu_custom_call.1']
    #allocation4 [shape = 's32[1]{0}', space=sflag, size = 0x4, scoped, tag = 'scoped memory for tpu_custom_call.1']
    #allocation5 [shape = 'u8[8192]{0}', space=vmem, size = 0x2000, scoped, tag = 'input window, operand 1, single buffered']
    #allocation6 [shape = 's32[1]{0}', space=sflag, size = 0x4, scoped, tag = 'scoped memory for tpu_custom_call.1']
    #allocation7 [shape = 'u8[16384]{0}', space=vmem, size = 0x4000, scoped, tag = 'input window, operand 2, single buffered']
    #allocation8 [shape = 'u8[16384]{0}', space=vmem, size = 0x4000, scoped, tag = 'input window, operand 4, single buffered']
    #allocation9 [shape = 's32[1]{0}', space=sflag, size = 0x4, scoped, tag = 'scoped memory for tpu_custom_call.1']
    #allocation10 [shape = 'u8[32768]{0}', space=vmem, size = 0x8000, scoped, tag = 'input window, operand 6, single buffered']
    #allocation11 [shape = 'u8[262144]{0}', space=vmem, size = 0x40000, scoped, tag = 'input window, operand 8, single buffered']
    #allocation12 [shape = 's32[1]{0}', space=sflag, size = 0x4, scoped, tag = 'scoped memory for tpu_custom_call.1']
    #allocation13 [shape = 'u8[16384]{0}', space=vmem, size = 0x4000, scoped, tag = 'output window, operand 0, single buffered']
    %15 = vsyncpa [#allocation3], 0
    %16 = vsyncpa [#allocation6], 0
    %17 = vsyncpa [#allocation9], 0
    %18 = vsyncpa [#allocation12], 0
    %19 = vsyncpa [#allocation4], 0
    // Predicated region
    $region2: #{tpu_custom_call.1} parent=1 // pred_check
      _
    $region3: #{tpu_custom_call.1} parent=1 // pred_check_branch
      %21 = sbr.rel (0) target = $region5
    $region4: #{tpu_custom_call.1} parent=1 // pred_region
      %s23 = ssub.s32 256, 256
      %24 = vsyncadd [#allocation3], %s23
      %s25 = sshll.u32 [#allocation2], 4
      %s26 = int_to_ptr.vmem [resolvable:$true] %s25
      %31 = dma.hbm_to_vmem [thread:$0]  %s0, 256, %s26, [#allocation3], 128, 128, 8
    $region5: #{tpu_custom_call.1} parent=1 // pred_fallthru
      _
    // Predicated region
    $region6: #{tpu_custom_call.1} parent=1 // pred_check
      _
    $region7: #{tpu_custom_call.1} parent=1 // pred_check_branch
      %33 = sbr.rel (0) target = $region9
    $region8: #{tpu_custom_call.1} parent=1 // pred_region
      %s35 = ssub.s32 256, 256
      %36 = vsyncadd [#allocation6], %s35
      %s37 = sshll.u32 [#allocation5], 4
      %s38 = int_to_ptr.vmem [resolvable:$true] %s37
      %43 = dma.hbm_to_vmem [thread:$0]  %s1, 256, %s38, [#allocation6], 128, 128, 8
    $region9: #{tpu_custom_call.1} parent=1 // pred_fallthru
      _
    // Predicated region
    $region10: #{tpu_custom_call.1} parent=1 // pred_check
      _
    $region11: #{tpu_custom_call.1} parent=1 // pred_check_branch
      %45 = sbr.rel (0) target = $region13
    $region12: #{tpu_custom_call.1} parent=1 // pred_region
      %s47 = ssub.s32 512, 512
      %48 = vsyncadd [#allocation6], %s47
      %s49 = sshll.u32 [#allocation7], 4
      %s50 = int_to_ptr.vmem [resolvable:$true] %s49
      %55 = dma.hbm_to_vmem [thread:$0]  %s2, 512, %s50, [#allocation6], 128, 128, 8
    $region13: #{tpu_custom_call.1} parent=1 // pred_fallthru
      _
    // Predicated region
    $region14: #{tpu_custom_call.1} parent=1 // pred_check
      _
    $region15: #{tpu_custom_call.1} parent=1 // pred_check_branch
      %57 = sbr.rel (0) target = $region17
    $region16: #{tpu_custom_call.1} parent=1 // pred_region
      _
    $region17: #{tpu_custom_call.1} parent=1 // pred_fallthru
      _
    // Predicated region
    $region18: #{tpu_custom_call.1} parent=1 // pred_check
      _
    $region19: #{tpu_custom_call.1} parent=1 // pred_check_branch
      %59 = sbr.rel (0) target = $region21
    $region20: #{tpu_custom_call.1} parent=1 // pred_region
      %s61 = ssub.s32 512, 512
      %62 = vsyncadd [#allocation9], %s61
      %s63 = sshll.u32 [#allocation8], 4
      %s64 = int_to_ptr.vmem [resolvable:$true] %s63
      %69 = dma.hbm_to_vmem [thread:$0]  %s4, 512, %s64, [#allocation9], 128, 128, 8
    $region21: #{tpu_custom_call.1} parent=1 // pred_fallthru
      _
    // Predicated region
    $region22: #{tpu_custom_call.1} parent=1 // pred_check
      _
    $region23: #{tpu_custom_call.1} parent=1 // pred_check_branch
      %71 = sbr.rel (0) target = $region25
    $region24: #{tpu_custom_call.1} parent=1 // pred_region
      _
    $region25: #{tpu_custom_call.1} parent=1 // pred_fallthru
      _
    // Predicated region
    $region26: #{tpu_custom_call.1} parent=1 // pred_check
      _
    $region27: #{tpu_custom_call.1} parent=1 // pred_check_branch
      %73 = sbr.rel (0) target = $region29
    $region28: #{tpu_custom_call.1} parent=1 // pred_region
      %s75 = ssub.s32 1024, 1024
      %76 = vsyncadd [#allocation9], %s75
      %s77 = sshll.u32 [#allocation10], 4
      %s78 = int_to_ptr.vmem [resolvable:$true] %s77
      %83 = dma.hbm_to_vmem [thread:$0]  %s6, 1024, %s78, [#allocation9], 256, 256, 16
    $region29: #{tpu_custom_call.1} parent=1 // pred_fallthru
      _
    // Predicated region
    $region30: #{tpu_custom_call.1} parent=1 // pred_check
      _
    $region31: #{tpu_custom_call.1} parent=1 // pred_check_branch
      %85 = sbr.rel (0) target = $region33
    $region32: #{tpu_custom_call.1} parent=1 // pred_region
      _
    $region33: #{tpu_custom_call.1} parent=1 // pred_fallthru
      _
    // Predicated region
    $region34: #{tpu_custom_call.1} parent=1 // pred_check
      _
    $region35: #{tpu_custom_call.1} parent=1 // pred_check_branch
      %87 = sbr.rel (0) target = $region37
    $region36: #{tpu_custom_call.1} parent=1 // pred_region
      %s89 = ssub.s32 8192, 8192
      %90 = vsyncadd [#allocation12], %s89
      %s91 = sshll.u32 [#allocation11], 4
      %s92 = int_to_ptr.vmem [resolvable:$true] %s91
      %97 = dma.hbm_to_vmem [thread:$0]  %s8, 8192, %s92, [#allocation12], 256, 256, 16
    $region37: #{tpu_custom_call.1} parent=1 // pred_fallthru
      _
    // Predicated region
    $region38: #{tpu_custom_call.1} parent=1 // pred_check
      _
    $region39: #{tpu_custom_call.1} parent=1 // pred_check_branch
      %99 = sbr.rel (0) target = $region41
    $region40: #{tpu_custom_call.1} parent=1 // pred_region
      _
    $region41: #{tpu_custom_call.1} parent=1 // pred_fallthru
      _
    // Predicated region
    $region42: #{tpu_custom_call.1} parent=1 // pred_check
      _
    $region43: #{tpu_custom_call.1} parent=1 // pred_check_branch
      %101 = sbr.rel (0) target = $region45
    $region44: #{tpu_custom_call.1} parent=1 // pred_region
      %102 = dma.done [#allocation3], 256
    $region45: #{tpu_custom_call.1} parent=1 // pred_fallthru
      _
    // Predicated region
    $region46: #{tpu_custom_call.1} parent=1 // pred_check
      _
    $region47: #{tpu_custom_call.1} parent=1 // pred_check_branch
      %104 = sbr.rel (0) target = $region49
    $region48: #{tpu_custom_call.1} parent=1 // pred_region
      %105 = dma.done [#allocation6], 256
    $region49: #{tpu_custom_call.1} parent=1 // pred_fallthru
      _
    // Predicated region
    $region50: #{tpu_custom_call.1} parent=1 // pred_check
      _
    $region51: #{tpu_custom_call.1} parent=1 // pred_check_branch
      %107 = sbr.rel (0) target = $region53
    $region52: #{tpu_custom_call.1} parent=1 // pred_region
      %108 = dma.done [#allocation6], 512
    $region53: #{tpu_custom_call.1} parent=1 // pred_fallthru
      _
    // Predicated region
    $region54: #{tpu_custom_call.1} parent=1 // pred_check
      _
    $region55: #{tpu_custom_call.1} parent=1 // pred_check_branch
      %110 = sbr.rel (0) target = $region57
    $region56: #{tpu_custom_call.1} parent=1 // pred_region
      %111 = dma.done [#allocation9], 512
    $region57: #{tpu_custom_call.1} parent=1 // pred_fallthru
      _
    // Predicated region
    $region58: #{tpu_custom_call.1} parent=1 // pred_check
      _
    $region59: #{tpu_custom_call.1} parent=1 // pred_check_branch
      %113 = sbr.rel (0) target = $region61
    $region60: #{tpu_custom_call.1} parent=1 // pred_region
      %114 = dma.done [#allocation9], 1024
    $region61: #{tpu_custom_call.1} parent=1 // pred_fallthru
      _
    // Predicated region
    $region62: #{tpu_custom_call.1} parent=1 // pred_check
      _
    $region63: #{tpu_custom_call.1} parent=1 // pred_check_branch
      %116 = sbr.rel (0) target = $region65
    $region64: #{tpu_custom_call.1} parent=1 // pred_region
      %117 = dma.done [#allocation12], 8192
    $region65: #{tpu_custom_call.1} parent=1 // pred_fallthru
      _
    %v118 = vld [vmem:[#allocation2] sm:$0xff]
    %v119 = vld [vmem:[#allocation2 + $0x8] sm:$0xff]
    %v120 = vld [vmem:[#allocation7] sm:$0xff]
    %v121 = vld [vmem:[#allocation7 + $0x8] sm:$0xff]
    %v122 = vld [vmem:[#allocation7 + $0x10] sm:$0xff]
    %v123 = vld [vmem:[#allocation7 + $0x18] sm:$0xff]
    %v124 = vld [vmem:[%s3] sm:$0x1]
    %v126 = vlaneseq
    %v127 = vshrl.u32 %v126, 7
    %v128 = vsub.s32 0, %v127
    %v129 = vrot.slane %v124, %v128
    %vm131 = vcmask 261120
    %v133 = vsel %vm131, %v118, 0
    %v136 = vsel %vm131, %v119, 0
    %138 = vmatprep.subr.mxu0 0.0
    %139 = vmatpush1.msra.mxu0 %v120
    %140 = vmatprep.subr.mxu0 0.0
    %141 = vmatpush1.msra.mxu0 %v121
    %142 = vmatprep.subr.mxu0 0.0
    %143 = vmatpush1.msra.mxu0 %v122
    %144 = vmatprep.subr.mxu0 0.0
    %145 = vmatpush1.msra.mxu0 %v123
    %146 = vmatprep.subr.mxu0 0.0
    %147 = vmatpush1.msra.mxu0 0.0
    %148 = vmatprep.subr.mxu0 0.0
    %149 = vmatpush1.msra.mxu0 0.0
    %150 = vmatprep.subr.mxu0 0.0
    %151 = vmatpush1.msra.mxu0 0.0
    %152 = vmatprep.subr.mxu0 0.0
    %153 = vmatpush1.msra.mxu0 0.0
    %154 = vmatprep.subr.mxu0 0.0
    %155 = vmatpush1.msra.mxu0 0.0
    %156 = vmatprep.subr.mxu0 0.0
    %157 = vmatpush1.msra.mxu0 0.0
    %158 = vmatprep.subr.mxu0 0.0
    %159 = vmatpush1.msra.mxu0 0.0
    %160 = vmatprep.subr.mxu0 0.0
    %161 = vmatpush1.msra.mxu0 0.0
    %162 = vmatprep.subr.mxu0 0.0
    %163 = vmatpush1.msra.mxu0 0.0
    %164 = vmatprep.subr.mxu0 0.0
    %165 = vmatpush1.msra.mxu0 0.0
    %166 = vmatprep.subr.mxu0 0.0
    %167 = vmatpush1.msra.mxu0 0.0
    %168 = vmatprep.subr.mxu0 0.0
    %169 = vmatpush1.msra.mxu0 0.0
    %170 = vmatprep.subr.mxu0 0.0
    %171 = vmatpush1.msra.mxu0 0.0
    %172 = vmatprep.subr.mxu0 0.0
    %173 = vmatpush1.msra.mxu0 0.0
    %174 = vmatprep.subr.mxu0 0.0
    %175 = vmatpush1.msra.mxu0 0.0
    %176 = vmatprep.subr.mxu0 0.0
    %177 = vmatpush1.msra.mxu0 0.0
    %178 = vmatprep.subr.mxu0 0.0
    %179 = vmatpush1.msra.mxu0 0.0
    %180 = vmatprep.subr.mxu0 0.0
    %181 = vmatpush1.msra.mxu0 0.0
    %182 = vmatprep.subr.mxu0 0.0
    %183 = vmatpush1.msra.mxu0 0.0
    %184 = vmatprep.subr.mxu0 0.0
    %185 = vmatpush1.msra.mxu0 0.0
    %186 = vmatprep.subr.mxu0 0.0
    %187 = vmatpush1.msra.mxu0 0.0
    %188 = vmatprep.subr.mxu0 0.0
    %189 = vmatpush1.msra.mxu0 0.0
    %190 = vmatprep.subr.mxu0 0.0
    %191 = vmatpush1.msra.mxu0 0.0
    %192 = vmatprep.subr.mxu0 0.0
    %193 = vmatpush1.msra.mxu0 0.0
    %194 = vmatprep.subr.mxu0 0.0
    %195 = vmatpush1.msra.mxu0 0.0
    %196 = vmatprep.subr.mxu0 0.0
    %197 = vmatpush1.msra.mxu0 0.0
    %198 = vmatprep.subr.mxu0 0.0
    %199 = vmatpush1.msra.mxu0 0.0
    %200 = vmatprep.subr.mxu0 0.0
    %201 = vmatpush1.msra.mxu0 0.0
    %202 = vmatprep.mubr.f32.mxu0 0.0
    %203 = vmatmul.mubr.f32.gmra.mrb[0].mxu0 %v133
    %v204 = vpop.f32.mrb[0].mxu0
    %v205 = vadd.f32 %v129, %v204
    %v206 = vpop.f32.mrb[0].mxu0
    %207 = vmatprep.mubr.f32.mxu0 0.0
    %208 = vmatmul.mubr.f32.gmra.mrb[0].mxu0 %v136
    %v209 = vpop.f32.mrb[0].mxu0
    %v210 = vadd.f32 %v129, %v209
    %v211 = vpop.f32.mrb[0].mxu0
    %212 = vdwg.mxu0
    %v213 = vxor.u32 %v205, 2147483648
    %v214 = vxor.u32 %v210, 2147483648
    %v215 = vmul.f32 %v213, 1.442695
    %v216 = vpow.pop %v215
    %v217 = vmul.f32 %v214, 1.442695
    %v218 = vpow.pop %v217
    %v219 = vadd.f32 %v216, 1.0
    %v220 = vadd.f32 %v218, 1.0
    %v221 = vrcp.pop %v219
    %v222 = vmul.f32 1.0, %v221
    %v223 = vrcp.pop %v220
    %v224 = vmul.f32 1.0, %v223
    %v225 = vld [vmem:[#allocation8] sm:$0xff]
    %v226 = vld [vmem:[#allocation8 + $0x8] sm:$0xff]
    %v227 = vld [vmem:[#allocation8 + $0x10] sm:$0xff]
    %v228 = vld [vmem:[#allocation8 + $0x18] sm:$0xff]
    %v229 = vld [vmem:[%s5] sm:$0x1]
    %v231 = vlaneseq
    %v232 = vshrl.u32 %v231, 7
    %v233 = vsub.s32 0, %v232
    %v234 = vrot.slane %v229, %v233
    %v237 = vsel %vm131, %v222, 0
    %v240 = vsel %vm131, %v224, 0
    %242 = vmatprep.subr.mxu0 0.0
    %243 = vmatpush1.msra.mxu0 %v225
    %244 = vmatprep.subr.mxu0 0.0
    %245 = vmatpush1.msra.mxu0 %v226
    %246 = vmatprep.subr.mxu0 0.0
    %247 = vmatpush1.msra.mxu0 %v227
    %248 = vmatprep.subr.mxu0 0.0
    %249 = vmatpush1.msra.mxu0 %v228
    %250 = vmatprep.subr.mxu0 0.0
    %251 = vmatpush1.msra.mxu0 0.0
    %252 = vmatprep.subr.mxu0 0.0
    %253 = vmatpush1.msra.mxu0 0.0
    %254 = vmatprep.subr.mxu0 0.0
    %255 = vmatpush1.msra.mxu0 0.0
    %256 = vmatprep.subr.mxu0 0.0
    %257 = vmatpush1.msra.mxu0 0.0
    %258 = vmatprep.subr.mxu0 0.0
    %259 = vmatpush1.msra.mxu0 0.0
    %260 = vmatprep.subr.mxu0 0.0
    %261 = vmatpush1.msra.mxu0 0.0
    %262 = vmatprep.subr.mxu0 0.0
    %263 = vmatpush1.msra.mxu0 0.0
    %264 = vmatprep.subr.mxu0 0.0
    %265 = vmatpush1.msra.mxu0 0.0
    %266 = vmatprep.subr.mxu0 0.0
    %267 = vmatpush1.msra.mxu0 0.0
    %268 = vmatprep.subr.mxu0 0.0
    %269 = vmatpush1.msra.mxu0 0.0
    %270 = vmatprep.subr.mxu0 0.0
    %271 = vmatpush1.msra.mxu0 0.0
    %272 = vmatprep.subr.mxu0 0.0
    %273 = vmatpush1.msra.mxu0 0.0
    %274 = vmatprep.subr.mxu0 0.0
    %275 = vmatpush1.msra.mxu0 0.0
    %276 = vmatprep.subr.mxu0 0.0
    %277 = vmatpush1.msra.mxu0 0.0
    %278 = vmatprep.subr.mxu0 0.0
    %279 = vmatpush1.msra.mxu0 0.0
    %280 = vmatprep.subr.mxu0 0.0
    %281 = vmatpush1.msra.mxu0 0.0
    %282 = vmatprep.subr.mxu0 0.0
    %283 = vmatpush1.msra.mxu0 0.0
    %284 = vmatprep.subr.mxu0 0.0
    %285 = vmatpush1.msra.mxu0 0.0
    %286 = vmatprep.subr.mxu0 0.0
    %287 = vmatpush1.msra.mxu0 0.0
    %288 = vmatprep.subr.mxu0 0.0
    %289 = vmatpush1.msra.mxu0 0.0
    %290 = vmatprep.subr.mxu0 0.0
    %291 = vmatpush1.msra.mxu0 0.0
    %292 = vmatprep.subr.mxu0 0.0
    %293 = vmatpush1.msra.mxu0 0.0
    %294 = vmatprep.subr.mxu0 0.0
    %295 = vmatpush1.msra.mxu0 0.0
    %296 = vmatprep.subr.mxu0 0.0
    %297 = vmatpush1.msra.mxu0 0.0
    %298 = vmatprep.subr.mxu0 0.0
    %299 = vmatpush1.msra.mxu0 0.0
    %300 = vmatprep.subr.mxu0 0.0
    %301 = vmatpush1.msra.mxu0 0.0
    %302 = vmatprep.subr.mxu0 0.0
    %303 = vmatpush1.msra.mxu0 0.0
    %304 = vmatprep.subr.mxu0 0.0
    %305 = vmatpush1.msra.mxu0 0.0
    %306 = vmatprep.mubr.f32.mxu0 0.0
    %307 = vmatmul.mubr.f32.gmra.mrb[0].mxu0 %v237
    %v308 = vpop.f32.mrb[0].mxu0
    %v309 = vadd.f32 %v234, %v308
    %v310 = vpop.f32.mrb[0].mxu0
    %311 = vmatprep.mubr.f32.mxu0 0.0
    %312 = vmatmul.mubr.f32.gmra.mrb[0].mxu0 %v240
    %v313 = vpop.f32.mrb[0].mxu0
    %v314 = vadd.f32 %v234, %v313
    %v315 = vpop.f32.mrb[0].mxu0
    %316 = vdwg.mxu0
    %v317 = vxor.u32 %v309, 2147483648
    %v318 = vxor.u32 %v314, 2147483648
    %v319 = vmul.f32 %v317, 1.442695
    %v320 = vpow.pop %v319
    %v321 = vmul.f32 %v318, 1.442695
    %v322 = vpow.pop %v321
    %v323 = vadd.f32 %v320, 1.0
    %v324 = vadd.f32 %v322, 1.0
    %v325 = vrcp.pop %v323
    %v326 = vmul.f32 1.0, %v325
    %v327 = vrcp.pop %v324
    %v328 = vmul.f32 1.0, %v327
    %v329 = vld [vmem:[#allocation5] sm:$0xff]
    %v330 = vld [vmem:[#allocation5 + $0x8] sm:$0xff]
    %v331 = vadd.f32 %v326, %v329
    %v332 = vadd.f32 %v328, %v330
    %v333 = vld [vmem:[#allocation10] sm:$0xff]
    %v334 = vld [vmem:[#allocation10 + $0x8] sm:$0xff]
    %v335 = vld [vmem:[#allocation10 + $0x10] sm:$0xff]
    %v336 = vld [vmem:[#allocation10 + $0x18] sm:$0xff]
    %v337 = vld [vmem:[#allocation10 + $0x20] sm:$0xff]
    %v338 = vld [vmem:[#allocation10 + $0x28] sm:$0xff]
    %v339 = vld [vmem:[#allocation10 + $0x30] sm:$0xff]
    %v340 = vld [vmem:[#allocation10 + $0x38] sm:$0xff]
    %v341 = vld [vmem:[%s7] sm:$0x3]
    %v343 = vlaneseq
    %v344 = vshrl.u32 %v343, 7
    %v345 = vsub.s32 0, %v344
    %v346 = vrot.slane %v341, %v345
    %v347 = vlaneseq
    %v348 = vshrl.u32 %v347, 7
    %v349 = vsub.s32 1, %v348
    %v350 = vrot.slane %v341, %v349
    %v354 = vsel %vm131, %v331, 0
    %v357 = vsel %vm131, %v332, 0
    %359 = vmatprep.subr.mxu0 %v334
    %360 = vmatpush1.msra.mxu0 %v333
    %361 = vmatprep.subr.mxu0 %v336
    %362 = vmatpush1.msra.mxu0 %v335
    %363 = vmatprep.subr.mxu0 %v338
    %364 = vmatpush1.msra.mxu0 %v337
    %365 = vmatprep.subr.mxu0 %v340
    %366 = vmatpush1.msra.mxu0 %v339
    %367 = vmatprep.subr.mxu0 0.0
    %368 = vmatpush1.msra.mxu0 0.0
    %369 = vmatprep.subr.mxu0 0.0
    %370 = vmatpush1.msra.mxu0 0.0
    %371 = vmatprep.subr.mxu0 0.0
    %372 = vmatpush1.msra.mxu0 0.0
    %373 = vmatprep.subr.mxu0 0.0
    %374 = vmatpush1.msra.mxu0 0.0
    %375 = vmatprep.subr.mxu0 0.0
    %376 = vmatpush1.msra.mxu0 0.0
    %377 = vmatprep.subr.mxu0 0.0
    %378 = vmatpush1.msra.mxu0 0.0
    %379 = vmatprep.subr.mxu0 0.0
    %380 = vmatpush1.msra.mxu0 0.0
    %381 = vmatprep.subr.mxu0 0.0
    %382 = vmatpush1.msra.mxu0 0.0
    %383 = vmatprep.subr.mxu0 0.0
    %384 = vmatpush1.msra.mxu0 0.0
    %385 = vmatprep.subr.mxu0 0.0
    %386 = vmatpush1.msra.mxu0 0.0
    %387 = vmatprep.subr.mxu0 0.0
    %388 = vmatpush1.msra.mxu0 0.0
    %389 = vmatprep.subr.mxu0 0.0
    %390 = vmatpush1.msra.mxu0 0.0
    %391 = vmatprep.subr.mxu0 0.0
    %392 = vmatpush1.msra.mxu0 0.0
    %393 = vmatprep.subr.mxu0 0.0
    %394 = vmatpush1.msra.mxu0 0.0
    %395 = vmatprep.subr.mxu0 0.0
    %396 = vmatpush1.msra.mxu0 0.0
    %397 = vmatprep.subr.mxu0 0.0
    %398 = vmatpush1.msra.mxu0 0.0
    %399 = vmatprep.subr.mxu0 0.0
    %400 = vmatpush1.msra.mxu0 0.0
    %401 = vmatprep.subr.mxu0 0.0
    %402 = vmatpush1.msra.mxu0 0.0
    %403 = vmatprep.subr.mxu0 0.0
    %404 = vmatpush1.msra.mxu0 0.0
    %405 = vmatprep.subr.mxu0 0.0
    %406 = vmatpush1.msra.mxu0 0.0
    %407 = vmatprep.subr.mxu0 0.0
    %408 = vmatpush1.msra.mxu0 0.0
    %409 = vmatprep.subr.mxu0 0.0
    %410 = vmatpush1.msra.mxu0 0.0
    %411 = vmatprep.subr.mxu0 0.0
    %412 = vmatpush1.msra.mxu0 0.0
    %413 = vmatprep.subr.mxu0 0.0
    %414 = vmatpush1.msra.mxu0 0.0
    %415 = vmatprep.subr.mxu0 0.0
    %416 = vmatpush1.msra.mxu0 0.0
    %417 = vmatprep.subr.mxu0 0.0
    %418 = vmatpush1.msra.mxu0 0.0
    %419 = vmatprep.subr.mxu0 0.0
    %420 = vmatpush1.msra.mxu0 0.0
    %421 = vmatprep.subr.mxu0 0.0
    %422 = vmatpush1.msra.mxu0 0.0
    %423 = vmatprep.mubr.f32.mxu0 0.0
    %424 = vmatmul.mubr.f32.gmra.mrb[0].mxu0 %v354
    %v425 = vpop.f32.mrb[0].mxu0
    %v426 = vadd.f32 %v346, %v425
    %v427 = vpop.f32.mrb[0].mxu0
    %v428 = vadd.f32 %v350, %v427
    %429 = vmatprep.mubr.f32.mxu0 0.0
    %430 = vmatmul.mubr.f32.gmra.mrb[0].mxu0 %v357
    %v431 = vpop.f32.mrb[0].mxu0
    %v432 = vadd.f32 %v346, %v431
    %v433 = vpop.f32.mrb[0].mxu0
    %v434 = vadd.f32 %v350, %v433
    %435 = vdwg.mxu0
    %v436 = vtanh.pop %v426
    %v437 = vtanh.pop %v428
    %v438 = vtanh.pop %v432
    %v439 = vtanh.pop %v434
    %v440 = vld [vmem:[#allocation11] sm:$0xff]
    %v441 = vld [vmem:[#allocation11 + $0x8] sm:$0xff]
    %v442 = vld [vmem:[#allocation11 + $0x10] sm:$0xff]
    %v443 = vld [vmem:[#allocation11 + $0x18] sm:$0xff]
    %v444 = vld [vmem:[#allocation11 + $0x20] sm:$0xff]
    %v445 = vld [vmem:[#allocation11 + $0x28] sm:$0xff]
    %v446 = vld [vmem:[#allocation11 + $0x30] sm:$0xff]
    %v447 = vld [vmem:[#allocation11 + $0x38] sm:$0xff]
    %v448 = vld [vmem:[#allocation11 + $0x40] sm:$0xff]
    %v449 = vld [vmem:[#allocation11 + $0x48] sm:$0xff]
    %v450 = vld [vmem:[#allocation11 + $0x50] sm:$0xff]
    %v451 = vld [vmem:[#allocation11 + $0x58] sm:$0xff]
    %v452 = vld [vmem:[#allocation11 + $0x60] sm:$0xff]
    %v453 = vld [vmem:[#allocation11 + $0x68] sm:$0xff]
    %v454 = vld [vmem:[#allocation11 + $0x70] sm:$0xff]
    %v455 = vld [vmem:[#allocation11 + $0x78] sm:$0xff]
    %v456 = vld [vmem:[#allocation11 + $0x80] sm:$0xff]
    %v457 = vld [vmem:[#allocation11 + $0x88] sm:$0xff]
    %v458 = vld [vmem:[#allocation11 + $0x90] sm:$0xff]
    %v459 = vld [vmem:[#allocation11 + $0x98] sm:$0xff]
    %v460 = vld [vmem:[#allocation11 + $0xa0] sm:$0xff]
    %v461 = vld [vmem:[#allocation11 + $0xa8] sm:$0xff]
    %v462 = vld [vmem:[#allocation11 + $0xb0] sm:$0xff]
    %v463 = vld [vmem:[#allocation11 + $0xb8] sm:$0xff]
    %v464 = vld [vmem:[#allocation11 + $0xc0] sm:$0xff]
    %v465 = vld [vmem:[#allocation11 + $0xc8] sm:$0xff]
    %v466 = vld [vmem:[#allocation11 + $0xd0] sm:$0xff]
    %v467 = vld [vmem:[#allocation11 + $0xd8] sm:$0xff]
    %v468 = vld [vmem:[#allocation11 + $0xe0] sm:$0xff]
    %v469 = vld [vmem:[#allocation11 + $0xe8] sm:$0xff]
    %v470 = vld [vmem:[#allocation11 + $0xf0] sm:$0xff]
    %v471 = vld [vmem:[#allocation11 + $0xf8] sm:$0xff]
    %v472 = vld [vmem:[#allocation11 + $0x100] sm:$0xff]
    %v473 = vld [vmem:[#allocation11 + $0x108] sm:$0xff]
    %v474 = vld [vmem:[#allocation11 + $0x110] sm:$0xff]
    %v475 = vld [vmem:[#allocation11 + $0x118] sm:$0xff]
    %v476 = vld [vmem:[#allocation11 + $0x120] sm:$0xff]
    %v477 = vld [vmem:[#allocation11 + $0x128] sm:$0xff]
    %v478 = vld [vmem:[#allocation11 + $0x130] sm:$0xff]
    %v479 = vld [vmem:[#allocation11 + $0x138] sm:$0xff]
    %v480 = vld [vmem:[#allocation11 + $0x140] sm:$0xff]
    %v481 = vld [vmem:[#allocation11 + $0x148] sm:$0xff]
    %v482 = vld [vmem:[#allocation11 + $0x150] sm:$0xff]
    %v483 = vld [vmem:[#allocation11 + $0x158] sm:$0xff]
    %v484 = vld [vmem:[#allocation11 + $0x160] sm:$0xff]
    %v485 = vld [vmem:[#allocation11 + $0x168] sm:$0xff]
    %v486 = vld [vmem:[#allocation11 + $0x170] sm:$0xff]
    %v487 = vld [vmem:[#allocation11 + $0x178] sm:$0xff]
    %v488 = vld [vmem:[#allocation11 + $0x180] sm:$0xff]
    %v489 = vld [vmem:[#allocation11 + $0x188] sm:$0xff]
    %v490 = vld [vmem:[#allocation11 + $0x190] sm:$0xff]
    %v491 = vld [vmem:[#allocation11 + $0x198] sm:$0xff]
    %v492 = vld [vmem:[#allocation11 + $0x1a0] sm:$0xff]
    %v493 = vld [vmem:[#allocation11 + $0x1a8] sm:$0xff]
    %v494 = vld [vmem:[#allocation11 + $0x1b0] sm:$0xff]
    %v495 = vld [vmem:[#allocation11 + $0x1b8] sm:$0xff]
    %v496 = vld [vmem:[#allocation11 + $0x1c0] sm:$0xff]
    %v497 = vld [vmem:[#allocation11 + $0x1c8] sm:$0xff]
    %v498 = vld [vmem:[#allocation11 + $0x1d0] sm:$0xff]
    %v499 = vld [vmem:[#allocation11 + $0x1d8] sm:$0xff]
    %v500 = vld [vmem:[#allocation11 + $0x1e0] sm:$0xff]
    %v501 = vld [vmem:[#allocation11 + $0x1e8] sm:$0xff]
    %v502 = vld [vmem:[#allocation11 + $0x1f0] sm:$0xff]
    %v503 = vld [vmem:[#allocation11 + $0x1f8] sm:$0xff]
    %v504 = vld [vmem:[%s9] sm:$0x3]
    %v506 = vlaneseq
    %v507 = vshrl.u32 %v506, 7
    %v508 = vsub.s32 0, %v507
    %v509 = vrot.slane %v504, %v508
    %v510 = vlaneseq
    %v511 = vshrl.u32 %v510, 7
    %v512 = vsub.s32 1, %v511
    %v513 = vrot.slane %v504, %v512
    %516 = vmatprep.subr.mxu0 %v441
    %517 = vmatpush1.msra.mxu0 %v440
    %518 = vmatprep.subr.mxu0 %v443
    %519 = vmatpush1.msra.mxu0 %v442
    %520 = vmatprep.subr.mxu0 %v445
    %521 = vmatpush1.msra.mxu0 %v444
    %522 = vmatprep.subr.mxu0 %v447
    %523 = vmatpush1.msra.mxu0 %v446
    %524 = vmatprep.subr.mxu0 %v449
    %525 = vmatpush1.msra.mxu0 %v448
    %526 = vmatprep.subr.mxu0 %v451
    %527 = vmatpush1.msra.mxu0 %v450
    %528 = vmatprep.subr.mxu0 %v453
    %529 = vmatpush1.msra.mxu0 %v452
    %530 = vmatprep.subr.mxu0 %v455
    %531 = vmatpush1.msra.mxu0 %v454
    %532 = vmatprep.subr.mxu0 %v457
    %533 = vmatpush1.msra.mxu0 %v456
    %534 = vmatprep.subr.mxu0 %v459
    %535 = vmatpush1.msra.mxu0 %v458
    %536 = vmatprep.subr.mxu0 %v461
    %537 = vmatpush1.msra.mxu0 %v460
    %538 = vmatprep.subr.mxu0 %v463
    %539 = vmatpush1.msra.mxu0 %v462
    %540 = vmatprep.subr.mxu0 %v465
    %541 = vmatpush1.msra.mxu0 %v464
    %542 = vmatprep.subr.mxu0 %v467
    %543 = vmatpush1.msra.mxu0 %v466
    %544 = vmatprep.subr.mxu0 %v469
    %545 = vmatpush1.msra.mxu0 %v468
    %546 = vmatprep.subr.mxu0 %v471
    %547 = vmatpush1.msra.mxu0 %v470
    %548 = vmatprep.subr.mxu0 %v473
    %549 = vmatpush1.msra.mxu0 %v472
    %550 = vmatprep.subr.mxu0 %v475
    %551 = vmatpush1.msra.mxu0 %v474
    %552 = vmatprep.subr.mxu0 %v477
    %553 = vmatpush1.msra.mxu0 %v476
    %554 = vmatprep.subr.mxu0 %v479
    %555 = vmatpush1.msra.mxu0 %v478
    %556 = vmatprep.subr.mxu0 %v481
    %557 = vmatpush1.msra.mxu0 %v480
    %558 = vmatprep.subr.mxu0 %v483
    %559 = vmatpush1.msra.mxu0 %v482
    %560 = vmatprep.subr.mxu0 %v485
    %561 = vmatpush1.msra.mxu0 %v484
    %562 = vmatprep.subr.mxu0 %v487
    %563 = vmatpush1.msra.mxu0 %v486
    %564 = vmatprep.subr.mxu0 %v489
    %565 = vmatpush1.msra.mxu0 %v488
    %566 = vmatprep.subr.mxu0 %v491
    %567 = vmatpush1.msra.mxu0 %v490
    %568 = vmatprep.subr.mxu0 %v493
    %569 = vmatpush1.msra.mxu0 %v492
    %570 = vmatprep.subr.mxu0 %v495
    %571 = vmatpush1.msra.mxu0 %v494
    %572 = vmatprep.subr.mxu0 %v497
    %573 = vmatpush1.msra.mxu0 %v496
    %574 = vmatprep.subr.mxu0 %v499
    %575 = vmatpush1.msra.mxu0 %v498
    %576 = vmatprep.subr.mxu0 %v501
    %577 = vmatpush1.msra.mxu0 %v500
    %578 = vmatprep.subr.mxu0 %v503
    %579 = vmatpush1.msra.mxu0 %v502
    %580 = vmatprep.mubr.f32.mxu0 %v437
    %581 = vmatmul.mubr.f32.gmra.mrb[0].mxu0 %v436
    %v582 = vpop.f32.mrb[0].mxu0
    %v583 = vadd.f32 %v509, %v582
    %v584 = vpop.f32.mrb[0].mxu0
    %v585 = vadd.f32 %v513, %v584
    %586 = vmatprep.mubr.f32.mxu0 %v439
    %587 = vmatmul.mubr.f32.gmra.mrb[0].mxu0 %v438
    %v588 = vpop.f32.mrb[0].mxu0
    %v589 = vadd.f32 %v509, %v588
    %v590 = vpop.f32.mrb[0].mxu0
    %v591 = vadd.f32 %v513, %v590
    %592 = vdwg.mxu0
    %593 = vst [vmem:[#allocation13] sm:$0xff] %v583
    %594 = vst [vmem:[#allocation13 + $0x8] sm:$0xff] %v585
    %595 = vst [vmem:[#allocation13 + $0x10] sm:$0xff] %v589
    %596 = vst [vmem:[#allocation13 + $0x18] sm:$0xff] %v591
    // Predicated region
    $region66: #{tpu_custom_call.1} parent=1 // pred_check
      _
    $region67: #{tpu_custom_call.1} parent=1 // pred_check_branch
      %598 = sbr.rel (0) target = $region69
    $region68: #{tpu_custom_call.1} parent=1 // pred_region
      %s600 = ssub.s32 512, 512
      %601 = vsyncadd [#allocation4], %s600
      %s602 = sshll.u32 [#allocation13], 4
      %s603 = int_to_ptr.vmem [resolvable:$true] %s602
      %608 = dma.vmem_to_hbm [thread:$0]  %s603, 512, %s10, [#allocation4], 256, 256, 16
    $region69: #{tpu_custom_call.1} parent=1 // pred_fallthru
      _
    // Predicated region
    $region70: #{tpu_custom_call.1} parent=1 // pred_check
      _
    $region71: #{tpu_custom_call.1} parent=1 // pred_check_branch
      %610 = sbr.rel (0) target = $region73
    $region72: #{tpu_custom_call.1} parent=1 // pred_region
      %611 = dma.done [#allocation4], 512
    $region73: #{tpu_custom_call.1} parent=1 // pred_fallthru
      _
    %612 = vsyncpa [#allocation3], 1
    %613 = vsyncpa [#allocation6], 1
    %614 = vsyncpa [#allocation9], 1
    %615 = vsyncpa [#allocation12], 1
    %616 = vsyncpa [#allocation4], 1

</llo_original>
